<compile_context>
chip_gen: v7x
topology: tpu7x:2x2x1
jax: 0.10.0
libtpu: 0.0.40
codegen_flags: <defaults>
</compile_context>

<pallas_src>
import jax
import jax.numpy as jnp
from jax.experimental import pallas as pl
from jax.experimental.pallas import tpu as pltpu

_LANES = 128
_SINGLE_BLOCK_MAX_ROWS = 256   # above this, always >= 2 grid steps (v7x 2 TCs)
_MAX_BLOCK_ROWS = 1024         # ~8 MiB double-buffered across 10 streams


def _round_up(x, m):
    return (x + m - 1) // m * m


def _elementwise_kernel(a_ref, b_ref, c_ref,
                        add_ref, sub_ref, mul_ref, div_ref,
                        gt_ref, lt_ref, eq_ref):
    a = a_ref[...]
    b = b_ref[...]
    c = c_ref[...]
    add_ref[...] = a + b
    sub_ref[...] = a - b
    mul_ref[...] = a * b
    # Matches the original module exactly: a / (b + 1e-10).
    div_ref[...] = a / (b + 1e-10)
    # Three boolean masks written directly (no packing round trip).
    gt_ref[...] = a > c
    lt_ref[...] = a < c
    eq_ref[...] = a == c


@jax.jit
def pt_module_forward(a, b, c):
    """Mirrors PtModule.forward(inputs=(a, b, c)) -> dict of results."""
    assert a.shape == b.shape == c.shape
    assert a.dtype == b.dtype == c.dtype
    # The 1e-10 epsilon only survives in >= f32 precision; this kernel assumes
    # float inputs (f32 in the reference module).
    assert jnp.issubdtype(a.dtype, jnp.floating)

    orig_shape = a.shape
    n = a.size

    # Lane-dense slab of exactly (rows, 128); rows is NOT rounded up to a
    # block multiple -- Pallas masks the ragged last block instead.
    rows = pl.cdiv(n, _LANES)
    padded_n = rows * _LANES

    def to_slab(x):
        xf = jnp.ravel(x)
        if padded_n != n:
            # Only the <128-element tail is padded; aligned inputs are a
            # zero-copy reshape.
            xf = jnp.pad(xf, (0, padded_n - n))
        return xf.reshape(rows, _LANES)

    a2, b2, c2 = to_slab(a), to_slab(b), to_slab(c)

    if rows <= _SINGLE_BLOCK_MAX_ROWS:
        # Single block that equals the full array dims (always a legal block
        # shape, even when rows isn't a multiple of 8/32).
        block_rows = rows
    else:
        # At least 2 blocks (so the "parallel" axis shards across v7x's two
        # TensorCores), capped at 1024 rows (v5e scoped-VMEM safe), rounded to
        # 32 for int8/bool sublane tiling of the mask outputs.
        block_rows = min(_MAX_BLOCK_ROWS, _round_up(pl.cdiv(rows, 2), 32))
    grid = (pl.cdiv(rows, block_rows),)

    spec = pl.BlockSpec((block_rows, _LANES), lambda i: (i, 0))
    f32_out = jax.ShapeDtypeStruct((rows, _LANES), a.dtype)
    bool_out = jax.ShapeDtypeStruct((rows, _LANES), jnp.bool_)

    itemsize = jnp.dtype(a.dtype).itemsize
    cost = pl.CostEstimate(
        flops=8 * padded_n,                       # add/sub/mul/div + 3 compares
        transcendentals=padded_n,                 # reciprocal inside the divide
        bytes_accessed=(7 * itemsize + 3) * padded_n,  # 3 in + 4 f32 out + 3 bool out
    )

    add, sub, mul, div, gt, lt, eq = pl.pallas_call(
        _elementwise_kernel,
        grid=grid,
        out_shape=(f32_out, f32_out, f32_out, f32_out,
                   bool_out, bool_out, bool_out),
        in_specs=[spec, spec, spec],
        out_specs=(spec, spec, spec, spec, spec, spec, spec),
        compiler_params=pltpu.CompilerParams(
            dimension_semantics=("parallel",),
        ),
        cost_estimate=cost,
    )(a2, b2, c2)

    def unflat(x):
        xf = x.reshape(padded_n)
        if padded_n != n:
            xf = xf[:n]
        return xf.reshape(orig_shape)

    return {
        'add': unflat(add),
        'sub': unflat(sub),
        'mul': unflat(mul),
        'div': unflat(div),
        'greater': unflat(gt),
        'less': unflat(lt),
        'equal': unflat(eq),
    }


if __name__ == "__main__":
    key = jax.random.PRNGKey(0)
    ka, kb, kc = jax.random.split(key, 3)
    shape = (2, 4, 16, 16)  # NCHW-style small shape
    a = jax.random.normal(ka, shape, dtype=jnp.float32)
    b = jax.random.normal(kb, shape, dtype=jnp.float32)
    c = jax.random.normal(kc, shape, dtype=jnp.float32)

    results = pt_module_forward(a, b, c)
    jax.block_until_ready(results)

    # Correctness check against plain JAX reference (same semantics as the
    # original PyTorch module, including its explicit 1e-10 epsilon).
    ref = {
        'add': a + b,
        'sub': a - b,
        'mul': a * b,
        'div': a / (b + 1e-10),
        'greater': a > c,
        'less': a < c,
        'equal': a == c,
    }
    for k in ref:
        if results[k].dtype == jnp.bool_:
            assert bool(jnp.all(results[k] == ref[k])), k
        else:
            assert bool(jnp.allclose(results[k], ref[k], rtol=1e-6, atol=1e-6)), k

    print("KERNEL_OK")
</pallas_src>

<mosaic_0001>
module attributes {stable_mosaic.version = 11 : i64} {
  func.func @_elementwise_kernel(%arg0: i32, %arg1: memref<16x128xf32, #tpu.memory_space<vmem>>, %arg2: memref<16x128xf32, #tpu.memory_space<vmem>>, %arg3: memref<16x128xf32, #tpu.memory_space<vmem>>, %arg4: memref<16x128xf32, #tpu.memory_space<vmem>>, %arg5: memref<16x128xf32, #tpu.memory_space<vmem>>, %arg6: memref<16x128xf32, #tpu.memory_space<vmem>>, %arg7: memref<16x128xf32, #tpu.memory_space<vmem>>, %arg8: memref<16x128xi32, #tpu.memory_space<vmem>>, %arg9: memref<16x128xi32, #tpu.memory_space<vmem>>, %arg10: memref<16x128xi32, #tpu.memory_space<vmem>>) attributes {dimension_semantics = [#tpu.dimension_semantics<parallel>], iteration_bounds = array<i64: 1>, scalar_prefetch = 0 : i64, scratch_operands = 0 : i64, tpu.core_type = #tpu.core_type<tc>, window_params = [{transform_indices = @transform_0, window_bounds = array<i64: 16, 128>}, {transform_indices = @transform_1, window_bounds = array<i64: 16, 128>}, {transform_indices = @transform_2, window_bounds = array<i64: 16, 128>}, {transform_indices = @transform_3, window_bounds = array<i64: 16, 128>}, {transform_indices = @transform_4, window_bounds = array<i64: 16, 128>}, {transform_indices = @transform_5, window_bounds = array<i64: 16, 128>}, {transform_indices = @transform_6, window_bounds = array<i64: 16, 128>}, {transform_indices = @transform_7, window_bounds = array<i64: 16, 128>}, {transform_indices = @transform_8, window_bounds = array<i64: 16, 128>}, {transform_indices = @transform_9, window_bounds = array<i64: 16, 128>}]} {
    %c0 = arith.constant 0 : index
    %c0_0 = arith.constant 0 : index
    %0 = vector.load %arg1[%c0, %c0_0] : memref<16x128xf32, #tpu.memory_space<vmem>>, vector<16x128xf32>
    %c0_1 = arith.constant 0 : index
    %c0_2 = arith.constant 0 : index
    %1 = vector.load %arg2[%c0_1, %c0_2] : memref<16x128xf32, #tpu.memory_space<vmem>>, vector<16x128xf32>
    %c0_3 = arith.constant 0 : index
    %c0_4 = arith.constant 0 : index
    %2 = vector.load %arg3[%c0_3, %c0_4] : memref<16x128xf32, #tpu.memory_space<vmem>>, vector<16x128xf32>
    %3 = arith.addf %0, %1 : vector<16x128xf32>
    %c0_5 = arith.constant 0 : index
    %c0_6 = arith.constant 0 : index
    %4 = vector.load %arg4[%c0_5, %c0_6] : memref<16x128xf32, #tpu.memory_space<vmem>>, vector<16x128xf32>
    tpu.vector_store %arg4[%c0_5, %c0_6], %3 {strides = array<i32>} : memref<16x128xf32, #tpu.memory_space<vmem>>, vector<16x128xf32>,
    %5 = arith.subf %0, %1 : vector<16x128xf32>
    %c0_7 = arith.constant 0 : index
    %c0_8 = arith.constant 0 : index
    %6 = vector.load %arg5[%c0_7, %c0_8] : memref<16x128xf32, #tpu.memory_space<vmem>>, vector<16x128xf32>
    tpu.vector_store %arg5[%c0_7, %c0_8], %5 {strides = array<i32>} : memref<16x128xf32, #tpu.memory_space<vmem>>, vector<16x128xf32>,
    %7 = arith.mulf %0, %1 : vector<16x128xf32>
    %c0_9 = arith.constant 0 : index
    %c0_10 = arith.constant 0 : index
    %8 = vector.load %arg6[%c0_9, %c0_10] : memref<16x128xf32, #tpu.memory_space<vmem>>, vector<16x128xf32>
    tpu.vector_store %arg6[%c0_9, %c0_10], %7 {strides = array<i32>} : memref<16x128xf32, #tpu.memory_space<vmem>>, vector<16x128xf32>,
    %cst = arith.constant 1.000000e-10 : f32
    %9 = vector.broadcast %cst : f32 to vector<16x128xf32>
    %10 = arith.addf %1, %9 : vector<16x128xf32>
    %11 = arith.divf %0, %10 : vector<16x128xf32>
    %c0_11 = arith.constant 0 : index
    %c0_12 = arith.constant 0 : index
    %12 = vector.load %arg7[%c0_11, %c0_12] : memref<16x128xf32, #tpu.memory_space<vmem>>, vector<16x128xf32>
    tpu.vector_store %arg7[%c0_11, %c0_12], %11 {strides = array<i32>} : memref<16x128xf32, #tpu.memory_space<vmem>>, vector<16x128xf32>,
    %13 = arith.cmpf ogt, %0, %2 : vector<16x128xf32>
    %c0_13 = arith.constant 0 : index
    %c0_14 = arith.constant 0 : index
    %14 = vector.load %arg8[%c0_13, %c0_14] : memref<16x128xi32, #tpu.memory_space<vmem>>, vector<16x128xi32>
    %15 = arith.extui %13 : vector<16x128xi1> to vector<16x128xi32>
    %cst_15 = arith.constant dense<0> : vector<16x128xi32>
    %16 = arith.cmpi ne, %14, %cst_15 : vector<16x128xi32>
    tpu.vector_store %arg8[%c0_13, %c0_14], %15 {strides = array<i32>} : memref<16x128xi32, #tpu.memory_space<vmem>>, vector<16x128xi32>,
    %17 = arith.cmpf olt, %0, %2 : vector<16x128xf32>
    %c0_16 = arith.constant 0 : index
    %c0_17 = arith.constant 0 : index
    %18 = vector.load %arg9[%c0_16, %c0_17] : memref<16x128xi32, #tpu.memory_space<vmem>>, vector<16x128xi32>
    %19 = arith.extui %17 : vector<16x128xi1> to vector<16x128xi32>
    %cst_18 = arith.constant dense<0> : vector<16x128xi32>
    %20 = arith.cmpi ne, %18, %cst_18 : vector<16x128xi32>
    tpu.vector_store %arg9[%c0_16, %c0_17], %19 {strides = array<i32>} : memref<16x128xi32, #tpu.memory_space<vmem>>, vector<16x128xi32>,
    %21 = arith.cmpf oeq, %0, %2 : vector<16x128xf32>
    %c0_19 = arith.constant 0 : index
    %c0_20 = arith.constant 0 : index
    %22 = vector.load %arg10[%c0_19, %c0_20] : memref<16x128xi32, #tpu.memory_space<vmem>>, vector<16x128xi32>
    %23 = arith.extui %21 : vector<16x128xi1> to vector<16x128xi32>
    %cst_21 = arith.constant dense<0> : vector<16x128xi32>
    %24 = arith.cmpi ne, %22, %cst_21 : vector<16x128xi32>
    tpu.vector_store %arg10[%c0_19, %c0_20], %23 {strides = array<i32>} : memref<16x128xi32, #tpu.memory_space<vmem>>, vector<16x128xi32>,
    return
  }
  func.func @transform_0(%arg0: i32) -> (i32, i32) {
    %c0_i32 = arith.constant 0 : i32
    %c0_i32_0 = arith.constant 0 : i32
    return %arg0, %c0_i32 : i32, i32
  }
  func.func @transform_1(%arg0: i32) -> (i32, i32) {
    %c0_i32 = arith.constant 0 : i32
    %c0_i32_0 = arith.constant 0 : i32
    return %arg0, %c0_i32 : i32, i32
  }
  func.func @transform_2(%arg0: i32) -> (i32, i32) {
    %c0_i32 = arith.constant 0 : i32
    %c0_i32_0 = arith.constant 0 : i32
    return %arg0, %c0_i32 : i32, i32
  }
  func.func @transform_3(%arg0: i32) -> (i32, i32) {
    %c0_i32 = arith.constant 0 : i32
    %c0_i32_0 = arith.constant 0 : i32
    return %arg0, %c0_i32 : i32, i32
  }
  func.func @transform_4(%arg0: i32) -> (i32, i32) {
    %c0_i32 = arith.constant 0 : i32
    %c0_i32_0 = arith.constant 0 : i32
    return %arg0, %c0_i32 : i32, i32
  }
  func.func @transform_5(%arg0: i32) -> (i32, i32) {
    %c0_i32 = arith.constant 0 : i32
    %c0_i32_0 = arith.constant 0 : i32
    return %arg0, %c0_i32 : i32, i32
  }
  func.func @transform_6(%arg0: i32) -> (i32, i32) {
    %c0_i32 = arith.constant 0 : i32
    %c0_i32_0 = arith.constant 0 : i32
    return %arg0, %c0_i32 : i32, i32
  }
  func.func @transform_7(%arg0: i32) -> (i32, i32) {
    %c0_i32 = arith.constant 0 : i32
    %c0_i32_0 = arith.constant 0 : i32
    return %arg0, %c0_i32 : i32, i32
  }
  func.func @transform_8(%arg0: i32) -> (i32, i32) {
    %c0_i32 = arith.constant 0 : i32
    %c0_i32_0 = arith.constant 0 : i32
    return %arg0, %c0_i32 : i32, i32
  }
  func.func @transform_9(%arg0: i32) -> (i32, i32) {
    %c0_i32 = arith.constant 0 : i32
    %c0_i32_0 = arith.constant 0 : i32
    return %arg0, %c0_i32 : i32, i32
  }
}

</mosaic_0001>

<llo_original>
// kernel: pt_module_forward.1
$region0: #{pt_module_forward.1}
  #allocation0 [shape = 'u32[]', space=smem, size = 0x4, offset = 0x4, fixed_abs, tag = 'smem constant byte address 0x4 - core index']
  #allocation1 [shape = 'u32[144,128]{1,0:T(1,128)}', space=vmem, size = 0x12000, scoped, tag = 'internal scratch']
  %s0 = inlined_call_operand.vmem [shape: f32[16,128], index: 0, kind: input, shape index: {}]
  %s1 = inlined_call_operand.vmem [shape: f32[16,128], index: 1, kind: input, shape index: {}]
  %s2 = inlined_call_operand.vmem [shape: f32[16,128], index: 2, kind: input, shape index: {}]
  %s3 = inlined_call_operand.vmem [shape: f32[16,128], index: 3, kind: output, shape index: {0}]
  %s4 = inlined_call_operand.vmem [shape: f32[16,128], index: 4, kind: output, shape index: {1}]
  %s5 = inlined_call_operand.vmem [shape: f32[16,128], index: 5, kind: output, shape index: {2}]
  %s6 = inlined_call_operand.vmem [shape: f32[16,128], index: 6, kind: output, shape index: {3}]
  %s7 = inlined_call_operand.vmem [shape: s32[16,128], index: 7, kind: output, shape index: {4}]
  %s8 = inlined_call_operand.vmem [shape: s32[16,128], index: 8, kind: output, shape index: {5}]
  %s9 = inlined_call_operand.vmem [shape: s32[16,128], index: 9, kind: output, shape index: {6}]
  %10 = xla_tuple %s3, %s4, %s5, %s6, %s7, %s8, %s9
  %s11 = sld [smem:[#allocation0]]
  $region70: #{pt_module_forward.1} parent=0
    _
  %s13 = ssub.s32 1, %s11
  %s14 = scalar_select 0, %s13, %s11
  // Predicated region
  $region2: #{pt_module_forward.1} parent=0 // pred_check
    _
  $region3: #{pt_module_forward.1} parent=0 // pred_check_branch
    %16 = sbr.rel (0) target = $region5
  $region4: #{pt_module_forward.1} parent=0 // pred_region
    _
  $region5: #{pt_module_forward.1} parent=0 // pred_fallthru
    _
  // Predicated region
  $region6: #{pt_module_forward.1} parent=0 // pred_check
    _
  $region7: #{pt_module_forward.1} parent=0 // pred_check_branch
    %18 = sbr.rel (0) target = $region9
  $region8: #{pt_module_forward.1} parent=0 // pred_region
    _
  $region9: #{pt_module_forward.1} parent=0 // pred_fallthru
    _
  // Predicated region
  $region10: #{pt_module_forward.1} parent=0 // pred_check
    _
  $region11: #{pt_module_forward.1} parent=0 // pred_check_branch
    %20 = sbr.rel (0) target = $region13
  $region12: #{pt_module_forward.1} parent=0 // pred_region
    _
  $region13: #{pt_module_forward.1} parent=0 // pred_fallthru
    _
  %v21 = vld [vmem:[%s0] sm:$0xff]
  %v22 = vld [vmem:[%s0 + $0x8] sm:$0xff]
  %v23 = vld [vmem:[%s1] sm:$0xff]
  %v24 = vld [vmem:[%s1 + $0x8] sm:$0xff]
  %v25 = vld [vmem:[%s2] sm:$0xff]
  %v26 = vld [vmem:[%s2 + $0x8] sm:$0xff]
  %v27 = vadd.f32 %v21, %v23
  %v28 = vadd.f32 %v22, %v24
  %29 = vst [vmem:[%s3] sm:$0xff] %v27
  %30 = vst [vmem:[%s3 + $0x8] sm:$0xff] %v28
  %v31 = vsub.f32 %v21, %v23
  %v32 = vsub.f32 %v22, %v24
  %33 = vst [vmem:[%s4] sm:$0xff] %v31
  %34 = vst [vmem:[%s4 + $0x8] sm:$0xff] %v32
  %v35 = vmul.f32 %v21, %v23
  %v36 = vmul.f32 %v22, %v24
  %37 = vst [vmem:[%s5] sm:$0xff] %v35
  %38 = vst [vmem:[%s5 + $0x8] sm:$0xff] %v36
  %v39 = vadd.f32 %v23, 1e-10
  %v40 = vadd.f32 %v24, 1e-10
  %v41 = vrcp.pop %v39
  %v42 = vmul.f32 %v21, %v41
  %v43 = vrcp.pop %v40
  %v44 = vmul.f32 %v22, %v43
  %45 = vst [vmem:[%s6] sm:$0xff] %v42
  %46 = vst [vmem:[%s6 + $0x8] sm:$0xff] %v44
  %vm47 = vcmp.gt.f32.partialorder %v21, %v25
  %vm48 = vcmp.gt.f32.partialorder %v22, %v26
  %v49 = vsel %vm47, 1, 0
  %v50 = vsel %vm48, 1, 0
  %51 = vst [vmem:[%s7] sm:$0xff] %v49
  %52 = vst [vmem:[%s7 + $0x8] sm:$0xff] %v50
  %vm53 = vcmp.lt.f32.partialorder %v21, %v25
  %vm54 = vcmp.lt.f32.partialorder %v22, %v26
  %v55 = vsel %vm53, 1, 0
  %v56 = vsel %vm54, 1, 0
  %57 = vst [vmem:[%s8] sm:$0xff] %v55
  %58 = vst [vmem:[%s8 + $0x8] sm:$0xff] %v56
  %vm59 = vcmp.eq.f32.partialorder %v21, %v25
  %vm60 = vcmp.eq.f32.partialorder %v22, %v26
  %v61 = vsel %vm59, 1, 0
  %v62 = vsel %vm60, 1, 0
  %63 = vst [vmem:[%s9] sm:$0xff] %v61
  %64 = vst [vmem:[%s9 + $0x8] sm:$0xff] %v62
  // Predicated region
  $region14: #{pt_module_forward.1} parent=0 // pred_check
    _
  $region15: #{pt_module_forward.1} parent=0 // pred_check_branch
    %66 = sbr.rel (0) target = $region17
  $region16: #{pt_module_forward.1} parent=0 // pred_region
    _
  $region17: #{pt_module_forward.1} parent=0 // pred_fallthru
    _
  // Predicated region
  $region18: #{pt_module_forward.1} parent=0 // pred_check
    _
  $region19: #{pt_module_forward.1} parent=0 // pred_check_branch
    %68 = sbr.rel (0) target = $region21
  $region20: #{pt_module_forward.1} parent=0 // pred_region
    _
  $region21: #{pt_module_forward.1} parent=0 // pred_fallthru
    _
  // Predicated region
  $region22: #{pt_module_forward.1} parent=0 // pred_check
    _
  $region23: #{pt_module_forward.1} parent=0 // pred_check_branch
    %70 = sbr.rel (0) target = $region25
  $region24: #{pt_module_forward.1} parent=0 // pred_region
    _
  $region25: #{pt_module_forward.1} parent=0 // pred_fallthru
    _
  // Predicated region
  $region26: #{pt_module_forward.1} parent=0 // pred_check
    _
  $region27: #{pt_module_forward.1} parent=0 // pred_check_branch
    %72 = sbr.rel (0) target = $region29
  $region28: #{pt_module_forward.1} parent=0 // pred_region
    _
  $region29: #{pt_module_forward.1} parent=0 // pred_fallthru
    _
  // Predicated region
  $region30: #{pt_module_forward.1} parent=0 // pred_check
    _
  $region31: #{pt_module_forward.1} parent=0 // pred_check_branch
    %74 = sbr.rel (0) target = $region33
  $region32: #{pt_module_forward.1} parent=0 // pred_region
    _
  $region33: #{pt_module_forward.1} parent=0 // pred_fallthru
    _
  // Predicated region
  $region34: #{pt_module_forward.1} parent=0 // pred_check
    _
  $region35: #{pt_module_forward.1} parent=0 // pred_check_branch
    %76 = sbr.rel (0) target = $region37
  $region36: #{pt_module_forward.1} parent=0 // pred_region
    _
  $region37: #{pt_module_forward.1} parent=0 // pred_fallthru
    _
  // Predicated region
  $region38: #{pt_module_forward.1} parent=0 // pred_check
    _
  $region39: #{pt_module_forward.1} parent=0 // pred_check_branch
    %78 = sbr.rel (0) target = $region41
  $region40: #{pt_module_forward.1} parent=0 // pred_region
    _
  $region41: #{pt_module_forward.1} parent=0 // pred_fallthru
    _
  // Predicated region
  $region42: #{pt_module_forward.1} parent=0 // pred_check
    _
  $region43: #{pt_module_forward.1} parent=0 // pred_check_branch
    %80 = sbr.rel (0) target = $region45
  $region44: #{pt_module_forward.1} parent=0 // pred_region
    _
  $region45: #{pt_module_forward.1} parent=0 // pred_fallthru
    _
  // Predicated region
  $region46: #{pt_module_forward.1} parent=0 // pred_check
    _
  $region47: #{pt_module_forward.1} parent=0 // pred_check_branch
    %82 = sbr.rel (0) target = $region49
  $region48: #{pt_module_forward.1} parent=0 // pred_region
    _
  $region49: #{pt_module_forward.1} parent=0 // pred_fallthru
    _
  // Predicated region
  $region50: #{pt_module_forward.1} parent=0 // pred_check
    _
  $region51: #{pt_module_forward.1} parent=0 // pred_check_branch
    %84 = sbr.rel (0) target = $region53
  $region52: #{pt_module_forward.1} parent=0 // pred_region
    _
  $region53: #{pt_module_forward.1} parent=0 // pred_fallthru
    _
  // Predicated region
  $region54: #{pt_module_forward.1} parent=0 // pred_check
    _
  $region55: #{pt_module_forward.1} parent=0 // pred_check_branch
    %86 = sbr.rel (0) target = $region57
  $region56: #{pt_module_forward.1} parent=0 // pred_region
    _
  $region57: #{pt_module_forward.1} parent=0 // pred_fallthru
    _
  // Predicated region
  $region58: #{pt_module_forward.1} parent=0 // pred_check
    _
  $region59: #{pt_module_forward.1} parent=0 // pred_check_branch
    %88 = sbr.rel (0) target = $region61
  $region60: #{pt_module_forward.1} parent=0 // pred_region
    _
  $region61: #{pt_module_forward.1} parent=0 // pred_fallthru
    _
  // Predicated region
  $region62: #{pt_module_forward.1} parent=0 // pred_check
    _
  $region63: #{pt_module_forward.1} parent=0 // pred_check_branch
    %90 = sbr.rel (0) target = $region65
  $region64: #{pt_module_forward.1} parent=0 // pred_region
    _
  $region65: #{pt_module_forward.1} parent=0 // pred_fallthru
    _
  // Predicated region
  $region66: #{pt_module_forward.1} parent=0 // pred_check
    _
  $region67: #{pt_module_forward.1} parent=0 // pred_check_branch
    %92 = sbr.rel (0) target = $region69
  $region68: #{pt_module_forward.1} parent=0 // pred_region
    _
  $region69: #{pt_module_forward.1} parent=0 // pred_fallthru
    _

</llo_original>
